<compile_context>
chip_gen: v5e
topology: v5e:2x2
jax: 0.10.0
libtpu: 0.0.40
codegen_flags: <defaults>
</compile_context>

<pallas_src>
import functools

import jax
import jax.numpy as jnp
from jax.experimental import pallas as pl
from jax.experimental.pallas import tpu as pltpu

# Logical sizes (from the PyTorch module).
IN_F = 2
H1, H2, H3, OUT_F = 100, 1000, 100, 2
# Lane-padded sizes (multiples of 128).
H1P, H2P, H3P, OUT_P = 128, 1024, 128, 128


def mlp_kernel(x_ref, w1_ref, b1_ref, w2_ref, b2_ref,
               w3_ref, b3_ref, w4_ref, b4_ref, o_ref):
    x = x_ref[...]  # (TB, 2) float32

    # Layer 1 (K=2): two VPU broadcast-FMAs instead of a depth-2 MXU matmul.
    h = (b1_ref[...]
         + x[:, 0:1] * w1_ref[0:1, :]
         + x[:, 1:2] * w1_ref[1:2, :])
    h = jnp.maximum(h, 0.0)

    # Layers 2-4: bf16 MXU matmuls, f32 accumulation; bias / ReLU in f32.
    h = jnp.dot(h.astype(jnp.bfloat16), w2_ref[...],
                preferred_element_type=jnp.float32) + b2_ref[...]
    h = jnp.maximum(h, 0.0)

    h = jnp.dot(h.astype(jnp.bfloat16), w3_ref[...],
                preferred_element_type=jnp.float32) + b3_ref[...]
    h = jnp.maximum(h, 0.0)

    out = jnp.dot(h.astype(jnp.bfloat16), w4_ref[...],
                  preferred_element_type=jnp.float32) + b4_ref[...]
    o_ref[...] = out.astype(o_ref.dtype)


def _round_up(x, m):
    return (x + m - 1) // m * m


def _pad2d(a, rows, cols, dtype):
    out = jnp.zeros((rows, cols), dtype=dtype)
    return out.at[:a.shape[0], :a.shape[1]].set(a.astype(dtype))


@functools.partial(jax.jit, static_argnames=("block_b",))
def earthquake_classifier_forward(x, params, block_b=512):
    """x: (B, 2) float32. params: dict with w{1..4} (in,out) and b{1..4} (1,out)."""
    B = x.shape[0]
    # Batch tile: multiple of 8, capped at block_b; pad the batch to a multiple.
    tb = min(block_b, _round_up(max(B, 1), 8))
    b_pad = _round_up(B, tb)

    xp = jnp.zeros((b_pad, IN_F), jnp.float32).at[:B, :].set(
        x.astype(jnp.float32))

    # Zero-pad params to lane-dense shapes (exact through ReLU / final slice).
    w1 = _pad2d(params["w1"], IN_F, H1P, jnp.float32)   # VPU layer stays f32
    b1 = _pad2d(params["b1"], 1, H1P, jnp.float32)
    w2 = _pad2d(params["w2"], H1P, H2P, jnp.bfloat16)
    b2 = _pad2d(params["b2"], 1, H2P, jnp.float32)
    w3 = _pad2d(params["w3"], H2P, H3P, jnp.bfloat16)
    b3 = _pad2d(params["b3"], 1, H3P, jnp.float32)
    w4 = _pad2d(params["w4"], H3P, OUT_P, jnp.bfloat16)
    b4 = _pad2d(params["b4"], 1, OUT_P, jnp.float32)

    grid = (b_pad // tb,)

    def tile_map(i):          # x / out tiles stream over the batch axis
        return (i, 0)

    def const_map(i):         # weights / biases: one block, VMEM-resident
        return (0, 0)

    in_specs = [
        pl.BlockSpec((tb, IN_F), tile_map),
        pl.BlockSpec(w1.shape, const_map),
        pl.BlockSpec(b1.shape, const_map),
        pl.BlockSpec(w2.shape, const_map),
        pl.BlockSpec(b2.shape, const_map),
        pl.BlockSpec(w3.shape, const_map),
        pl.BlockSpec(b3.shape, const_map),
        pl.BlockSpec(w4.shape, const_map),
        pl.BlockSpec(b4.shape, const_map),
    ]
    out_specs = pl.BlockSpec((tb, OUT_P), tile_map)

    out = pl.pallas_call(
        mlp_kernel,
        out_shape=jax.ShapeDtypeStruct((b_pad, OUT_P), jnp.float32),
        grid=grid,
        in_specs=in_specs,
        out_specs=out_specs,
        compiler_params=pltpu.CompilerParams(
            dimension_semantics=("parallel",)),
    )(xp, w1, b1, w2, b2, w3, b3, w4, b4)

    return out[:B, :OUT_F]


def init_params(key, input_size):
    """Mimics torch.nn.Linear default init (U[-1/sqrt(fan_in), +1/sqrt(fan_in)]).

    Weights stored as (in_features, out_features); biases as (1, out_features).
    """
    dims = [(input_size, H1), (H1, H2), (H2, H3), (H3, OUT_F)]
    params = {}
    keys = jax.random.split(key, 2 * len(dims))
    for i, (fan_in, fan_out) in enumerate(dims):
        bound = 1.0 / jnp.sqrt(jnp.float32(fan_in))
        params[f"w{i + 1}"] = jax.random.uniform(
            keys[2 * i], (fan_in, fan_out),
            minval=-bound, maxval=bound, dtype=jnp.float32)
        params[f"b{i + 1}"] = jax.random.uniform(
            keys[2 * i + 1], (1, fan_out),
            minval=-bound, maxval=bound, dtype=jnp.float32)
    return params


def reference_forward_f32(x, p):
    h = jnp.maximum(x @ p["w1"] + p["b1"], 0.0)
    h = jnp.maximum(h @ p["w2"] + p["b2"], 0.0)
    h = jnp.maximum(h @ p["w3"] + p["b3"], 0.0)
    return h @ p["w4"] + p["b4"]


def reference_forward_mixed(x, p):
    """Mirrors the kernel numerics: bf16 matmul inputs, f32 accumulation."""
    def mm(a, w):
        return jnp.dot(a.astype(jnp.bfloat16), w.astype(jnp.bfloat16),
                       preferred_element_type=jnp.float32)
    h = jnp.maximum(x @ p["w1"] + p["b1"], 0.0)   # layer 1 stays f32 (VPU path)
    h = jnp.maximum(mm(h, p["w2"]) + p["b2"], 0.0)
    h = jnp.maximum(mm(h, p["w3"]) + p["b3"], 0.0)
    return mm(h, p["w4"]) + p["b4"]


if __name__ == "__main__":
    input_size = 2          # ml_features = ['PGA', 'NaturalFreq']
    batch = 8

    key = jax.random.PRNGKey(0)
    k_x, k_p = jax.random.split(key)
    x = jax.random.normal(k_x, (batch, input_size), dtype=jnp.float32)
    params = init_params(k_p, input_size)

    out = earthquake_classifier_forward(x, params)
    out = jax.block_until_ready(out)
    assert out.shape == (batch, 2)

    # Tight check against a reference with identical bf16/f32 mixed numerics.
    ref_mixed = reference_forward_mixed(x, params)
    assert jnp.allclose(out, ref_mixed, atol=1e-3, rtol=1e-3), (
        jnp.max(jnp.abs(out - ref_mixed)))

    # Loose sanity check against the pure-f32 reference (bf16 MXU inputs).
    ref_f32 = reference_forward_f32(x, params)
    assert jnp.allclose(out, ref_f32, atol=5e-2, rtol=5e-2), (
        jnp.max(jnp.abs(out - ref_f32)))

    print("KERNEL_OK")
</pallas_src>

<mosaic_0001>
module attributes {stable_mosaic.version = 11 : i64} {
  func.func @mlp_kernel(%arg0: i32, %arg1: memref<8x2xf32, #tpu.memory_space<vmem>>, %arg2: memref<2x128xf32, #tpu.memory_space<vmem>>, %arg3: memref<1x128xf32, #tpu.memory_space<vmem>>, %arg4: memref<128x1024xbf16, #tpu.memory_space<vmem>>, %arg5: memref<1x1024xf32, #tpu.memory_space<vmem>>, %arg6: memref<1024x128xbf16, #tpu.memory_space<vmem>>, %arg7: memref<1x128xf32, #tpu.memory_space<vmem>>, %arg8: memref<128x128xbf16, #tpu.memory_space<vmem>>, %arg9: memref<1x128xf32, #tpu.memory_space<vmem>>, %arg10: memref<8x128xf32, #tpu.memory_space<vmem>>) attributes {dimension_semantics = [#tpu.dimension_semantics<parallel>], iteration_bounds = array<i64: 1>, scalar_prefetch = 0 : i64, scratch_operands = 0 : i64, tpu.core_type = #tpu.core_type<tc>, window_params = [{transform_indices = @transform_0, window_bounds = array<i64: 8, 2>}, {pipeline_mode = #tpu.pipeline_mode<synchronous>, transform_indices = @transform_1, window_bounds = array<i64: 2, 128>}, {pipeline_mode = #tpu.pipeline_mode<synchronous>, transform_indices = @transform_2, window_bounds = array<i64: 1, 128>}, {pipeline_mode = #tpu.pipeline_mode<synchronous>, transform_indices = @transform_3, window_bounds = array<i64: 128, 1024>}, {pipeline_mode = #tpu.pipeline_mode<synchronous>, transform_indices = @transform_4, window_bounds = array<i64: 1, 1024>}, {pipeline_mode = #tpu.pipeline_mode<synchronous>, transform_indices = @transform_5, window_bounds = array<i64: 1024, 128>}, {pipeline_mode = #tpu.pipeline_mode<synchronous>, transform_indices = @transform_6, window_bounds = array<i64: 1, 128>}, {pipeline_mode = #tpu.pipeline_mode<synchronous>, transform_indices = @transform_7, window_bounds = array<i64: 128, 128>}, {pipeline_mode = #tpu.pipeline_mode<synchronous>, transform_indices = @transform_8, window_bounds = array<i64: 1, 128>}, {transform_indices = @transform_9, window_bounds = array<i64: 8, 128>}]} {
    %c0 = arith.constant 0 : index
    %c0_0 = arith.constant 0 : index
    %0 = vector.load %arg1[%c0, %c0_0] : memref<8x2xf32, #tpu.memory_space<vmem>>, vector<8x2xf32>
    %c0_1 = arith.constant 0 : index
    %c0_2 = arith.constant 0 : index
    %1 = vector.load %arg3[%c0_1, %c0_2] : memref<1x128xf32, #tpu.memory_space<vmem>>, vector<1x128xf32>
    %2 = vector.extract_strided_slice %0 {offsets = [0, 0], sizes = [8, 1], strides = [1, 1]} : vector<8x2xf32> to vector<8x1xf32>
    %c0_3 = arith.constant 0 : index
    %c0_4 = arith.constant 0 : index
    %3 = vector.load %arg2[%c0_3, %c0_4] : memref<2x128xf32, #tpu.memory_space<vmem>>, vector<1x128xf32>
    %4 = vector.broadcast %2 : vector<8x1xf32> to vector<8x128xf32>
    %5 = vector.broadcast %3 : vector<1x128xf32> to vector<8x128xf32>
    %6 = arith.mulf %4, %5 : vector<8x128xf32>
    %7 = vector.broadcast %1 : vector<1x128xf32> to vector<8x128xf32>
    %8 = arith.addf %7, %6 : vector<8x128xf32>
    %9 = vector.extract_strided_slice %0 {offsets = [0, 1], sizes = [8, 1], strides = [1, 1]} : vector<8x2xf32> to vector<8x1xf32>
    %c1 = arith.constant 1 : index
    %c0_5 = arith.constant 0 : index
    %10 = vector.load %arg2[%c1, %c0_5] : memref<2x128xf32, #tpu.memory_space<vmem>>, vector<1x128xf32>
    %11 = vector.broadcast %9 : vector<8x1xf32> to vector<8x128xf32>
    %12 = vector.broadcast %10 : vector<1x128xf32> to vector<8x128xf32>
    %13 = arith.mulf %11, %12 : vector<8x128xf32>
    %14 = arith.addf %8, %13 : vector<8x128xf32>
    %cst = arith.constant 0.000000e+00 : f32
    %15 = vector.broadcast %cst : f32 to vector<8x128xf32>
    %16 = arith.maximumf %14, %15 : vector<8x128xf32>
    %17 = arith.truncf %16 : vector<8x128xf32> to vector<8x128xbf16>
    %c0_6 = arith.constant 0 : index
    %c0_7 = arith.constant 0 : index
    %18 = vector.load %arg4[%c0_6, %c0_7] : memref<128x1024xbf16, #tpu.memory_space<vmem>>, vector<128x1024xbf16>
    %cst_8 = arith.constant dense<0.000000e+00> : vector<8x1024xf32>
    %19 = tpu.matmul %17, %18, %cst_8 {dimension_numbers = #tpu.dot_dimension_numbers<[1], [0], [0], [1], [0, 0, 1, 1], [], []>} : vector<8x128xbf16>, vector<128x1024xbf16>, vector<8x1024xf32> -> vector<8x1024xf32>
    %c0_9 = arith.constant 0 : index
    %c0_10 = arith.constant 0 : index
    %20 = vector.load %arg5[%c0_9, %c0_10] : memref<1x1024xf32, #tpu.memory_space<vmem>>, vector<1x1024xf32>
    %21 = vector.broadcast %20 : vector<1x1024xf32> to vector<8x1024xf32>
    %22 = arith.addf %19, %21 : vector<8x1024xf32>
    %cst_11 = arith.constant 0.000000e+00 : f32
    %23 = vector.broadcast %cst_11 : f32 to vector<8x1024xf32>
    %24 = arith.maximumf %22, %23 : vector<8x1024xf32>
    %25 = arith.truncf %24 : vector<8x1024xf32> to vector<8x1024xbf16>
    %c0_12 = arith.constant 0 : index
    %c0_13 = arith.constant 0 : index
    %26 = vector.load %arg6[%c0_12, %c0_13] : memref<1024x128xbf16, #tpu.memory_space<vmem>>, vector<1024x128xbf16>
    %cst_14 = arith.constant dense<0.000000e+00> : vector<8x128xf32>
    %27 = tpu.matmul %25, %26, %cst_14 {dimension_numbers = #tpu.dot_dimension_numbers<[1], [0], [0], [1], [0, 0, 1, 1], [], []>} : vector<8x1024xbf16>, vector<1024x128xbf16>, vector<8x128xf32> -> vector<8x128xf32>
    %c0_15 = arith.constant 0 : index
    %c0_16 = arith.constant 0 : index
    %28 = vector.load %arg7[%c0_15, %c0_16] : memref<1x128xf32, #tpu.memory_space<vmem>>, vector<1x128xf32>
    %29 = vector.broadcast %28 : vector<1x128xf32> to vector<8x128xf32>
    %30 = arith.addf %27, %29 : vector<8x128xf32>
    %cst_17 = arith.constant 0.000000e+00 : f32
    %31 = vector.broadcast %cst_17 : f32 to vector<8x128xf32>
    %32 = arith.maximumf %30, %31 : vector<8x128xf32>
    %33 = arith.truncf %32 : vector<8x128xf32> to vector<8x128xbf16>
    %c0_18 = arith.constant 0 : index
    %c0_19 = arith.constant 0 : index
    %34 = vector.load %arg8[%c0_18, %c0_19] : memref<128x128xbf16, #tpu.memory_space<vmem>>, vector<128x128xbf16>
    %cst_20 = arith.constant dense<0.000000e+00> : vector<8x128xf32>
    %35 = tpu.matmul %33, %34, %cst_20 {dimension_numbers = #tpu.dot_dimension_numbers<[1], [0], [0], [1], [0, 0, 1, 1], [], []>} : vector<8x128xbf16>, vector<128x128xbf16>, vector<8x128xf32> -> vector<8x128xf32>
    %c0_21 = arith.constant 0 : index
    %c0_22 = arith.constant 0 : index
    %36 = vector.load %arg9[%c0_21, %c0_22] : memref<1x128xf32, #tpu.memory_space<vmem>>, vector<1x128xf32>
    %37 = vector.broadcast %36 : vector<1x128xf32> to vector<8x128xf32>
    %38 = arith.addf %35, %37 : vector<8x128xf32>
    %c0_23 = arith.constant 0 : index
    %c0_24 = arith.constant 0 : index
    %39 = vector.load %arg10[%c0_23, %c0_24] : memref<8x128xf32, #tpu.memory_space<vmem>>, vector<8x128xf32>
    tpu.vector_store %arg10[%c0_23, %c0_24], %38 {strides = array<i32>} : memref<8x128xf32, #tpu.memory_space<vmem>>, vector<8x128xf32>,
    return
  }
  func.func @transform_0(%arg0: i32) -> (i32, i32) {
    %c0_i32 = arith.constant 0 : i32
    %c0_i32_0 = arith.constant 0 : i32
    return %arg0, %c0_i32 : i32, i32
  }
  func.func @transform_1(%arg0: i32) -> (i32, i32) {
    %c0_i32 = arith.constant 0 : i32
    %c0_i32_0 = arith.constant 0 : i32
    %c0_i32_1 = arith.constant 0 : i32
    return %c0_i32, %c0_i32_0 : i32, i32
  }
  func.func @transform_2(%arg0: i32) -> (i32, i32) {
    %c0_i32 = arith.constant 0 : i32
    %c0_i32_0 = arith.constant 0 : i32
    %c0_i32_1 = arith.constant 0 : i32
    return %c0_i32, %c0_i32_0 : i32, i32
  }
  func.func @transform_3(%arg0: i32) -> (i32, i32) {
    %c0_i32 = arith.constant 0 : i32
    %c0_i32_0 = arith.constant 0 : i32
    %c0_i32_1 = arith.constant 0 : i32
    return %c0_i32, %c0_i32_0 : i32, i32
  }
  func.func @transform_4(%arg0: i32) -> (i32, i32) {
    %c0_i32 = arith.constant 0 : i32
    %c0_i32_0 = arith.constant 0 : i32
    %c0_i32_1 = arith.constant 0 : i32
    return %c0_i32, %c0_i32_0 : i32, i32
  }
  func.func @transform_5(%arg0: i32) -> (i32, i32) {
    %c0_i32 = arith.constant 0 : i32
    %c0_i32_0 = arith.constant 0 : i32
    %c0_i32_1 = arith.constant 0 : i32
    return %c0_i32, %c0_i32_0 : i32, i32
  }
  func.func @transform_6(%arg0: i32) -> (i32, i32) {
    %c0_i32 = arith.constant 0 : i32
    %c0_i32_0 = arith.constant 0 : i32
    %c0_i32_1 = arith.constant 0 : i32
    return %c0_i32, %c0_i32_0 : i32, i32
  }
  func.func @transform_7(%arg0: i32) -> (i32, i32) {
    %c0_i32 = arith.constant 0 : i32
    %c0_i32_0 = arith.constant 0 : i32
    %c0_i32_1 = arith.constant 0 : i32
    return %c0_i32, %c0_i32_0 : i32, i32
  }
  func.func @transform_8(%arg0: i32) -> (i32, i32) {
    %c0_i32 = arith.constant 0 : i32
    %c0_i32_0 = arith.constant 0 : i32
    %c0_i32_1 = arith.constant 0 : i32
    return %c0_i32, %c0_i32_0 : i32, i32
  }
  func.func @transform_9(%arg0: i32) -> (i32, i32) {
    %c0_i32 = arith.constant 0 : i32
    %c0_i32_0 = arith.constant 0 : i32
    return %arg0, %c0_i32 : i32, i32
  }
}

</mosaic_0001>

<llo_original>
// kernel: earthquake_classifier_forward.1
$region0: #{earthquake_classifier_forward.1}
  #allocation0 [shape = 'u32[]', space=smem, size = 0x4, offset = 0x4, fixed_abs, tag = 'smem constant byte address 0x4 - core index']
  #allocation1 [shape = 'u32[72,128]{1,0:T(1,128)}', space=vmem, size = 0x9000, scoped, tag = 'internal scratch']
  %s0 = inlined_call_operand.vmem [shape: f32[8,2], index: 0, kind: input, shape index: {}]
  %s1 = inlined_call_operand.vmem [shape: f32[2,128], index: 1, kind: input, shape index: {}]
  %s2 = inlined_call_operand.vmem [shape: f32[1,128], index: 2, kind: input, shape index: {}]
  %s3 = inlined_call_operand.vmem [shape: bf16[128,1024], index: 3, kind: input, shape index: {}]
  %s4 = inlined_call_operand.vmem [shape: f32[1,1024], index: 4, kind: input, shape index: {}]
  %s5 = inlined_call_operand.vmem [shape: bf16[1024,128], index: 5, kind: input, shape index: {}]
  %s6 = inlined_call_operand.vmem [shape: f32[1,128], index: 6, kind: input, shape index: {}]
  %s7 = inlined_call_operand.vmem [shape: bf16[128,128], index: 7, kind: input, shape index: {}]
  %s8 = inlined_call_operand.vmem [shape: f32[1,128], index: 8, kind: input, shape index: {}]
  %s9 = inlined_call_operand.vmem [shape: f32[8,128], index: 9, kind: output, shape index: {}]
  %s10 = sld [smem:[#allocation0]]
  $region46: #{earthquake_classifier_forward.1} parent=0
    _
  %s12 = ssub.s32 1, %s10
  %s13 = scalar_select 0, %s12, %s10
  // Predicated region
  $region2: #{earthquake_classifier_forward.1} parent=0 // pred_check
    _
  $region3: #{earthquake_classifier_forward.1} parent=0 // pred_check_branch
    %15 = sbr.rel (0) target = $region5
  $region4: #{earthquake_classifier_forward.1} parent=0 // pred_region
    _
  $region5: #{earthquake_classifier_forward.1} parent=0 // pred_fallthru
    _
  // Predicated region
  $region6: #{earthquake_classifier_forward.1} parent=0 // pred_check
    _
  $region7: #{earthquake_classifier_forward.1} parent=0 // pred_check_branch
    %17 = sbr.rel (0) target = $region9
  $region8: #{earthquake_classifier_forward.1} parent=0 // pred_region
    _
  $region9: #{earthquake_classifier_forward.1} parent=0 // pred_fallthru
    _
  // Predicated region
  $region10: #{earthquake_classifier_forward.1} parent=0 // pred_check
    _
  $region11: #{earthquake_classifier_forward.1} parent=0 // pred_check_branch
    %19 = sbr.rel (0) target = $region13
  $region12: #{earthquake_classifier_forward.1} parent=0 // pred_region
    _
  $region13: #{earthquake_classifier_forward.1} parent=0 // pred_fallthru
    _
  // Predicated region
  $region14: #{earthquake_classifier_forward.1} parent=0 // pred_check
    _
  $region15: #{earthquake_classifier_forward.1} parent=0 // pred_check_branch
    %21 = sbr.rel (0) target = $region17
  $region16: #{earthquake_classifier_forward.1} parent=0 // pred_region
    _
  $region17: #{earthquake_classifier_forward.1} parent=0 // pred_fallthru
    _
  // Predicated region
  $region18: #{earthquake_classifier_forward.1} parent=0 // pred_check
    _
  $region19: #{earthquake_classifier_forward.1} parent=0 // pred_check_branch
    %23 = sbr.rel (0) target = $region21
  $region20: #{earthquake_classifier_forward.1} parent=0 // pred_region
    _
  $region21: #{earthquake_classifier_forward.1} parent=0 // pred_fallthru
    _
  // Predicated region
  $region22: #{earthquake_classifier_forward.1} parent=0 // pred_check
    _
  $region23: #{earthquake_classifier_forward.1} parent=0 // pred_check_branch
    %25 = sbr.rel (0) target = $region25
  $region24: #{earthquake_classifier_forward.1} parent=0 // pred_region
    _
  $region25: #{earthquake_classifier_forward.1} parent=0 // pred_fallthru
    _
  // Predicated region
  $region26: #{earthquake_classifier_forward.1} parent=0 // pred_check
    _
  $region27: #{earthquake_classifier_forward.1} parent=0 // pred_check_branch
    %27 = sbr.rel (0) target = $region29
  $region28: #{earthquake_classifier_forward.1} parent=0 // pred_region
    _
  $region29: #{earthquake_classifier_forward.1} parent=0 // pred_fallthru
    _
  // Predicated region
  $region30: #{earthquake_classifier_forward.1} parent=0 // pred_check
    _
  $region31: #{earthquake_classifier_forward.1} parent=0 // pred_check_branch
    %29 = sbr.rel (0) target = $region33
  $region32: #{earthquake_classifier_forward.1} parent=0 // pred_region
    _
  $region33: #{earthquake_classifier_forward.1} parent=0 // pred_fallthru
    _
  // Predicated region
  $region34: #{earthquake_classifier_forward.1} parent=0 // pred_check
    _
  $region35: #{earthquake_classifier_forward.1} parent=0 // pred_check_branch
    %31 = sbr.rel (0) target = $region37
  $region36: #{earthquake_classifier_forward.1} parent=0 // pred_region
    _
  $region37: #{earthquake_classifier_forward.1} parent=0 // pred_fallthru
    _
  %v32 = vld [vmem:[%s0] sm:$0xff]
  %v33 = vld [vmem:[%s2] sm:$0x1]
  %v34 = vld [vmem:[%s1] sm:$0x1]
  %36 = vset.pattern.permute.xlu0 0
  %37 = vperm.xlu0 %36, %v32
  %v38 = vpop.permute.xlu0 %37
  %v40 = vperm.slane %v34, 0
  %v41 = vmul.f32 %v38, %v40
  %v43 = vperm.slane %v33, 0
  %v45 = vadd.f32 %v43, %v41
  %v46 = vld [vmem:[%s1 + $0x1] sm:$0x1]
  %47 = vset.pattern.permute.xlu0 1
  %48 = vperm.xlu0 %47, %v32
  %v49 = vpop.permute.xlu0 %48
  %v51 = vperm.slane %v46, 0
  %v52 = vmul.f32 %v49, %v51
  %v53 = vadd.f32 %v45, %v52
  %v54 = vmax.f32 %v53, 0.0
  %v55 = vpack.c.bf16 %v54, %v54
  %v56 = vld [vmem:[%s3] sm:$0xff]
  %v57 = vld [vmem:[%s3 + $0x8] sm:$0xff]
  %v58 = vld [vmem:[%s3 + $0x10] sm:$0xff]
  %v59 = vld [vmem:[%s3 + $0x18] sm:$0xff]
  %v60 = vld [vmem:[%s3 + $0x20] sm:$0xff]
  %v61 = vld [vmem:[%s3 + $0x28] sm:$0xff]
  %v62 = vld [vmem:[%s3 + $0x30] sm:$0xff]
  %v63 = vld [vmem:[%s3 + $0x38] sm:$0xff]
  %v64 = vld [vmem:[%s3 + $0x40] sm:$0xff]
  %v65 = vld [vmem:[%s3 + $0x48] sm:$0xff]
  %v66 = vld [vmem:[%s3 + $0x50] sm:$0xff]
  %v67 = vld [vmem:[%s3 + $0x58] sm:$0xff]
  %v68 = vld [vmem:[%s3 + $0x60] sm:$0xff]
  %v69 = vld [vmem:[%s3 + $0x68] sm:$0xff]
  %v70 = vld [vmem:[%s3 + $0x70] sm:$0xff]
  %v71 = vld [vmem:[%s3 + $0x78] sm:$0xff]
  %v72 = vld [vmem:[%s3 + $0x80] sm:$0xff]
  %v73 = vld [vmem:[%s3 + $0x88] sm:$0xff]
  %v74 = vld [vmem:[%s3 + $0x90] sm:$0xff]
  %v75 = vld [vmem:[%s3 + $0x98] sm:$0xff]
  %v76 = vld [vmem:[%s3 + $0xa0] sm:$0xff]
  %v77 = vld [vmem:[%s3 + $0xa8] sm:$0xff]
  %v78 = vld [vmem:[%s3 + $0xb0] sm:$0xff]
  %v79 = vld [vmem:[%s3 + $0xb8] sm:$0xff]
  %v80 = vld [vmem:[%s3 + $0xc0] sm:$0xff]
  %v81 = vld [vmem:[%s3 + $0xc8] sm:$0xff]
  %v82 = vld [vmem:[%s3 + $0xd0] sm:$0xff]
  %v83 = vld [vmem:[%s3 + $0xd8] sm:$0xff]
  %v84 = vld [vmem:[%s3 + $0xe0] sm:$0xff]
  %v85 = vld [vmem:[%s3 + $0xe8] sm:$0xff]
  %v86 = vld [vmem:[%s3 + $0xf0] sm:$0xff]
  %v87 = vld [vmem:[%s3 + $0xf8] sm:$0xff]
  %v88 = vld [vmem:[%s3 + $0x100] sm:$0xff]
  %v89 = vld [vmem:[%s3 + $0x108] sm:$0xff]
  %v90 = vld [vmem:[%s3 + $0x110] sm:$0xff]
  %v91 = vld [vmem:[%s3 + $0x118] sm:$0xff]
  %v92 = vld [vmem:[%s3 + $0x120] sm:$0xff]
  %v93 = vld [vmem:[%s3 + $0x128] sm:$0xff]
  %v94 = vld [vmem:[%s3 + $0x130] sm:$0xff]
  %v95 = vld [vmem:[%s3 + $0x138] sm:$0xff]
  %v96 = vld [vmem:[%s3 + $0x140] sm:$0xff]
  %v97 = vld [vmem:[%s3 + $0x148] sm:$0xff]
  %v98 = vld [vmem:[%s3 + $0x150] sm:$0xff]
  %v99 = vld [vmem:[%s3 + $0x158] sm:$0xff]
  %v100 = vld [vmem:[%s3 + $0x160] sm:$0xff]
  %v101 = vld [vmem:[%s3 + $0x168] sm:$0xff]
  %v102 = vld [vmem:[%s3 + $0x170] sm:$0xff]
  %v103 = vld [vmem:[%s3 + $0x178] sm:$0xff]
  %v104 = vld [vmem:[%s3 + $0x180] sm:$0xff]
  %v105 = vld [vmem:[%s3 + $0x188] sm:$0xff]
  %v106 = vld [vmem:[%s3 + $0x190] sm:$0xff]
  %v107 = vld [vmem:[%s3 + $0x198] sm:$0xff]
  %v108 = vld [vmem:[%s3 + $0x1a0] sm:$0xff]
  %v109 = vld [vmem:[%s3 + $0x1a8] sm:$0xff]
  %v110 = vld [vmem:[%s3 + $0x1b0] sm:$0xff]
  %v111 = vld [vmem:[%s3 + $0x1b8] sm:$0xff]
  %v112 = vld [vmem:[%s3 + $0x1c0] sm:$0xff]
  %v113 = vld [vmem:[%s3 + $0x1c8] sm:$0xff]
  %v114 = vld [vmem:[%s3 + $0x1d0] sm:$0xff]
  %v115 = vld [vmem:[%s3 + $0x1d8] sm:$0xff]
  %v116 = vld [vmem:[%s3 + $0x1e0] sm:$0xff]
  %v117 = vld [vmem:[%s3 + $0x1e8] sm:$0xff]
  %v118 = vld [vmem:[%s3 + $0x1f0] sm:$0xff]
  %v119 = vld [vmem:[%s3 + $0x1f8] sm:$0xff]
  %v120 = vld [vmem:[%s4] sm:$0xff]
  %v122 = vperm.slane %v120, 0
  %v123 = vperm.slane %v120, 1
  %v124 = vperm.slane %v120, 2
  %v125 = vperm.slane %v120, 3
  %v126 = vperm.slane %v120, 4
  %v127 = vperm.slane %v120, 5
  %v128 = vperm.slane %v120, 6
  %v129 = vperm.slane %v120, 7
  %v202 = vunpack.c.l.b16 %v56
  %v203 = vunpack.c.h.b16 %v56
  %v204 = vunpack.c.l.b16 %v57
  %v205 = vunpack.c.h.b16 %v57
  %v206 = vunpack.c.l.b16 %v58
  %v207 = vunpack.c.h.b16 %v58
  %v208 = vunpack.c.l.b16 %v59
  %v209 = vunpack.c.h.b16 %v59
  %v210 = vunpack.c.l.b16 %v60
  %v211 = vunpack.c.h.b16 %v60
  %v212 = vunpack.c.l.b16 %v61
  %v213 = vunpack.c.h.b16 %v61
  %v214 = vunpack.c.l.b16 %v62
  %v215 = vunpack.c.h.b16 %v62
  %v216 = vunpack.c.l.b16 %v63
  %v217 = vunpack.c.h.b16 %v63
  %v218 = vunpack.c.l.b16 %v64
  %v219 = vunpack.c.h.b16 %v64
  %v220 = vunpack.c.l.b16 %v65
  %v221 = vunpack.c.h.b16 %v65
  %v222 = vunpack.c.l.b16 %v66
  %v223 = vunpack.c.h.b16 %v66
  %v224 = vunpack.c.l.b16 %v67
  %v225 = vunpack.c.h.b16 %v67
  %v226 = vunpack.c.l.b16 %v68
  %v227 = vunpack.c.h.b16 %v68
  %v228 = vunpack.c.l.b16 %v69
  %v229 = vunpack.c.h.b16 %v69
  %v230 = vunpack.c.l.b16 %v70
  %v231 = vunpack.c.h.b16 %v70
  %v232 = vunpack.c.l.b16 %v71
  %v233 = vunpack.c.h.b16 %v71
  %v234 = vunpack.c.l.b16 %v72
  %v235 = vunpack.c.h.b16 %v72
  %v236 = vunpack.c.l.b16 %v73
  %v237 = vunpack.c.h.b16 %v73
  %v238 = vunpack.c.l.b16 %v74
  %v239 = vunpack.c.h.b16 %v74
  %v240 = vunpack.c.l.b16 %v75
  %v241 = vunpack.c.h.b16 %v75
  %v242 = vunpack.c.l.b16 %v76
  %v243 = vunpack.c.h.b16 %v76
  %v244 = vunpack.c.l.b16 %v77
  %v245 = vunpack.c.h.b16 %v77
  %v246 = vunpack.c.l.b16 %v78
  %v247 = vunpack.c.h.b16 %v78
  %v248 = vunpack.c.l.b16 %v79
  %v249 = vunpack.c.h.b16 %v79
  %v250 = vunpack.c.l.b16 %v80
  %v251 = vunpack.c.h.b16 %v80
  %v252 = vunpack.c.l.b16 %v81
  %v253 = vunpack.c.h.b16 %v81
  %v254 = vunpack.c.l.b16 %v82
  %v255 = vunpack.c.h.b16 %v82
  %v256 = vunpack.c.l.b16 %v83
  %v257 = vunpack.c.h.b16 %v83
  %v258 = vunpack.c.l.b16 %v84
  %v259 = vunpack.c.h.b16 %v84
  %v260 = vunpack.c.l.b16 %v85
  %v261 = vunpack.c.h.b16 %v85
  %v262 = vunpack.c.l.b16 %v86
  %v263 = vunpack.c.h.b16 %v86
  %v264 = vunpack.c.l.b16 %v87
  %v265 = vunpack.c.h.b16 %v87
  %v266 = vunpack.c.l.b16 %v88
  %v267 = vunpack.c.h.b16 %v88
  %v268 = vunpack.c.l.b16 %v89
  %v269 = vunpack.c.h.b16 %v89
  %v270 = vunpack.c.l.b16 %v90
  %v271 = vunpack.c.h.b16 %v90
  %v272 = vunpack.c.l.b16 %v91
  %v273 = vunpack.c.h.b16 %v91
  %v274 = vunpack.c.l.b16 %v92
  %v275 = vunpack.c.h.b16 %v92
  %v276 = vunpack.c.l.b16 %v93
  %v277 = vunpack.c.h.b16 %v93
  %v278 = vunpack.c.l.b16 %v94
  %v279 = vunpack.c.h.b16 %v94
  %v280 = vunpack.c.l.b16 %v95
  %v281 = vunpack.c.h.b16 %v95
  %v282 = vunpack.c.l.b16 %v96
  %v283 = vunpack.c.h.b16 %v96
  %v284 = vunpack.c.l.b16 %v97
  %v285 = vunpack.c.h.b16 %v97
  %v286 = vunpack.c.l.b16 %v98
  %v287 = vunpack.c.h.b16 %v98
  %v288 = vunpack.c.l.b16 %v99
  %v289 = vunpack.c.h.b16 %v99
  %v290 = vunpack.c.l.b16 %v100
  %v291 = vunpack.c.h.b16 %v100
  %v292 = vunpack.c.l.b16 %v101
  %v293 = vunpack.c.h.b16 %v101
  %v294 = vunpack.c.l.b16 %v102
  %v295 = vunpack.c.h.b16 %v102
  %v296 = vunpack.c.l.b16 %v103
  %v297 = vunpack.c.h.b16 %v103
  %v298 = vunpack.c.l.b16 %v104
  %v299 = vunpack.c.h.b16 %v104
  %v300 = vunpack.c.l.b16 %v105
  %v301 = vunpack.c.h.b16 %v105
  %v302 = vunpack.c.l.b16 %v106
  %v303 = vunpack.c.h.b16 %v106
  %v304 = vunpack.c.l.b16 %v107
  %v305 = vunpack.c.h.b16 %v107
  %v306 = vunpack.c.l.b16 %v108
  %v307 = vunpack.c.h.b16 %v108
  %v308 = vunpack.c.l.b16 %v109
  %v309 = vunpack.c.h.b16 %v109
  %v310 = vunpack.c.l.b16 %v110
  %v311 = vunpack.c.h.b16 %v110
  %v312 = vunpack.c.l.b16 %v111
  %v313 = vunpack.c.h.b16 %v111
  %v314 = vunpack.c.l.b16 %v112
  %v315 = vunpack.c.h.b16 %v112
  %v316 = vunpack.c.l.b16 %v113
  %v317 = vunpack.c.h.b16 %v113
  %v318 = vunpack.c.l.b16 %v114
  %v319 = vunpack.c.h.b16 %v114
  %v320 = vunpack.c.l.b16 %v115
  %v321 = vunpack.c.h.b16 %v115
  %v322 = vunpack.c.l.b16 %v116
  %v323 = vunpack.c.h.b16 %v116
  %v324 = vunpack.c.l.b16 %v117
  %v325 = vunpack.c.h.b16 %v117
  %v326 = vunpack.c.l.b16 %v118
  %v327 = vunpack.c.h.b16 %v118
  %v328 = vunpack.c.l.b16 %v119
  %v329 = vunpack.c.h.b16 %v119
  %v330 = vpack.c.b16 %v210, %v202
  %v331 = vpack.c.b16 %v211, %v203
  %v332 = vpack.c.b16 %v212, %v204
  %v333 = vpack.c.b16 %v213, %v205
  %v334 = vpack.c.b16 %v214, %v206
  %v335 = vpack.c.b16 %v215, %v207
  %v336 = vpack.c.b16 %v216, %v208
  %v337 = vpack.c.b16 %v217, %v209
  %v338 = vpack.c.b16 %v226, %v218
  %v339 = vpack.c.b16 %v227, %v219
  %v340 = vpack.c.b16 %v228, %v220
  %v341 = vpack.c.b16 %v229, %v221
  %v342 = vpack.c.b16 %v230, %v222
  %v343 = vpack.c.b16 %v231, %v223
  %v344 = vpack.c.b16 %v232, %v224
  %v345 = vpack.c.b16 %v233, %v225
  %v346 = vpack.c.b16 %v242, %v234
  %v347 = vpack.c.b16 %v243, %v235
  %v348 = vpack.c.b16 %v244, %v236
  %v349 = vpack.c.b16 %v245, %v237
  %v350 = vpack.c.b16 %v246, %v238
  %v351 = vpack.c.b16 %v247, %v239
  %v352 = vpack.c.b16 %v248, %v240
  %v353 = vpack.c.b16 %v249, %v241
  %v354 = vpack.c.b16 %v258, %v250
  %v355 = vpack.c.b16 %v259, %v251
  %v356 = vpack.c.b16 %v260, %v252
  %v357 = vpack.c.b16 %v261, %v253
  %v358 = vpack.c.b16 %v262, %v254
  %v359 = vpack.c.b16 %v263, %v255
  %v360 = vpack.c.b16 %v264, %v256
  %v361 = vpack.c.b16 %v265, %v257
  %v362 = vpack.c.b16 %v274, %v266
  %v363 = vpack.c.b16 %v275, %v267
  %v364 = vpack.c.b16 %v276, %v268
  %v365 = vpack.c.b16 %v277, %v269
  %v366 = vpack.c.b16 %v278, %v270
  %v367 = vpack.c.b16 %v279, %v271
  %v368 = vpack.c.b16 %v280, %v272
  %v369 = vpack.c.b16 %v281, %v273
  %v370 = vpack.c.b16 %v290, %v282
  %v371 = vpack.c.b16 %v291, %v283
  %v372 = vpack.c.b16 %v292, %v284
  %v373 = vpack.c.b16 %v293, %v285
  %v374 = vpack.c.b16 %v294, %v286
  %v375 = vpack.c.b16 %v295, %v287
  %v376 = vpack.c.b16 %v296, %v288
  %v377 = vpack.c.b16 %v297, %v289
  %v378 = vpack.c.b16 %v306, %v298
  %v379 = vpack.c.b16 %v307, %v299
  %v380 = vpack.c.b16 %v308, %v300
  %v381 = vpack.c.b16 %v309, %v301
  %v382 = vpack.c.b16 %v310, %v302
  %v383 = vpack.c.b16 %v311, %v303
  %v384 = vpack.c.b16 %v312, %v304
  %v385 = vpack.c.b16 %v313, %v305
  %v386 = vpack.c.b16 %v322, %v314
  %v387 = vpack.c.b16 %v323, %v315
  %v388 = vpack.c.b16 %v324, %v316
  %v389 = vpack.c.b16 %v325, %v317
  %v390 = vpack.c.b16 %v326, %v318
  %v391 = vpack.c.b16 %v327, %v319
  %v392 = vpack.c.b16 %v328, %v320
  %v393 = vpack.c.b16 %v329, %v321
  %458 = vmatpush.bf16.msra.mxu0 %v386
  %459 = vmatpush.bf16.msra.mxu0 %v378
  %460 = vmatpush.bf16.msra.mxu0 %v370
  %461 = vmatpush.bf16.msra.mxu0 %v362
  %462 = vmatpush.bf16.msra.mxu0 %v354
  %463 = vmatpush.bf16.msra.mxu0 %v346
  %464 = vmatpush.bf16.msra.mxu0 %v338
  %465 = vmatpush.bf16.msra.mxu0 %v330
  %466 = vmatmul.bf16.gmra.mxu0 %v55
  %v467 = vpop.f32.mrf.mxu0
  %v468 = vadd.f32 %v122, %v467
  %v469 = vpop.f32.mrf.mxu0
  %470 = vdwg.mxu0
  %471 = vmatpush.bf16.msra.mxu0 %v387
  %472 = vmatpush.bf16.msra.mxu0 %v379
  %473 = vmatpush.bf16.msra.mxu0 %v371
  %474 = vmatpush.bf16.msra.mxu0 %v363
  %475 = vmatpush.bf16.msra.mxu0 %v355
  %476 = vmatpush.bf16.msra.mxu0 %v347
  %477 = vmatpush.bf16.msra.mxu0 %v339
  %478 = vmatpush.bf16.msra.mxu0 %v331
  %479 = vmatmul.bf16.gmra.mxu0 %v55
  %v480 = vpop.f32.mrf.mxu0
  %v481 = vadd.f32 %v123, %v480
  %v482 = vpop.f32.mrf.mxu0
  %483 = vdwg.mxu0
  %484 = vmatpush.bf16.msra.mxu0 %v388
  %485 = vmatpush.bf16.msra.mxu0 %v380
  %486 = vmatpush.bf16.msra.mxu0 %v372
  %487 = vmatpush.bf16.msra.mxu0 %v364
  %488 = vmatpush.bf16.msra.mxu0 %v356
  %489 = vmatpush.bf16.msra.mxu0 %v348
  %490 = vmatpush.bf16.msra.mxu0 %v340
  %491 = vmatpush.bf16.msra.mxu0 %v332
  %492 = vmatmul.bf16.gmra.mxu0 %v55
  %v493 = vpop.f32.mrf.mxu0
  %v494 = vadd.f32 %v124, %v493
  %v495 = vpop.f32.mrf.mxu0
  %496 = vdwg.mxu0
  %497 = vmatpush.bf16.msra.mxu0 %v389
  %498 = vmatpush.bf16.msra.mxu0 %v381
  %499 = vmatpush.bf16.msra.mxu0 %v373
  %500 = vmatpush.bf16.msra.mxu0 %v365
  %501 = vmatpush.bf16.msra.mxu0 %v357
  %502 = vmatpush.bf16.msra.mxu0 %v349
  %503 = vmatpush.bf16.msra.mxu0 %v341
  %504 = vmatpush.bf16.msra.mxu0 %v333
  %505 = vmatmul.bf16.gmra.mxu0 %v55
  %v506 = vpop.f32.mrf.mxu0
  %v507 = vadd.f32 %v125, %v506
  %v508 = vpop.f32.mrf.mxu0
  %509 = vdwg.mxu0
  %510 = vmatpush.bf16.msra.mxu0 %v390
  %511 = vmatpush.bf16.msra.mxu0 %v382
  %512 = vmatpush.bf16.msra.mxu0 %v374
  %513 = vmatpush.bf16.msra.mxu0 %v366
  %514 = vmatpush.bf16.msra.mxu0 %v358
  %515 = vmatpush.bf16.msra.mxu0 %v350
  %516 = vmatpush.bf16.msra.mxu0 %v342
  %517 = vmatpush.bf16.msra.mxu0 %v334
  %518 = vmatmul.bf16.gmra.mxu0 %v55
  %v519 = vpop.f32.mrf.mxu0
  %v520 = vadd.f32 %v126, %v519
  %v521 = vpop.f32.mrf.mxu0
  %522 = vdwg.mxu0
  %523 = vmatpush.bf16.msra.mxu0 %v391
  %524 = vmatpush.bf16.msra.mxu0 %v383
  %525 = vmatpush.bf16.msra.mxu0 %v375
  %526 = vmatpush.bf16.msra.mxu0 %v367
  %527 = vmatpush.bf16.msra.mxu0 %v359
  %528 = vmatpush.bf16.msra.mxu0 %v351
  %529 = vmatpush.bf16.msra.mxu0 %v343
  %530 = vmatpush.bf16.msra.mxu0 %v335
  %531 = vmatmul.bf16.gmra.mxu0 %v55
  %v532 = vpop.f32.mrf.mxu0
  %v533 = vadd.f32 %v127, %v532
  %v534 = vpop.f32.mrf.mxu0
  %535 = vdwg.mxu0
  %536 = vmatpush.bf16.msra.mxu0 %v392
  %537 = vmatpush.bf16.msra.mxu0 %v384
  %538 = vmatpush.bf16.msra.mxu0 %v376
  %539 = vmatpush.bf16.msra.mxu0 %v368
  %540 = vmatpush.bf16.msra.mxu0 %v360
  %541 = vmatpush.bf16.msra.mxu0 %v352
  %542 = vmatpush.bf16.msra.mxu0 %v344
  %543 = vmatpush.bf16.msra.mxu0 %v336
  %544 = vmatmul.bf16.gmra.mxu0 %v55
  %v545 = vpop.f32.mrf.mxu0
  %v546 = vadd.f32 %v128, %v545
  %v547 = vpop.f32.mrf.mxu0
  %548 = vdwg.mxu0
  %549 = vmatpush.bf16.msra.mxu0 %v393
  %550 = vmatpush.bf16.msra.mxu0 %v385
  %551 = vmatpush.bf16.msra.mxu0 %v377
  %552 = vmatpush.bf16.msra.mxu0 %v369
  %553 = vmatpush.bf16.msra.mxu0 %v361
  %554 = vmatpush.bf16.msra.mxu0 %v353
  %555 = vmatpush.bf16.msra.mxu0 %v345
  %556 = vmatpush.bf16.msra.mxu0 %v337
  %557 = vmatmul.bf16.gmra.mxu0 %v55
  %v558 = vpop.f32.mrf.mxu0
  %v559 = vadd.f32 %v129, %v558
  %v560 = vpop.f32.mrf.mxu0
  %561 = vdwg.mxu0
  %v562 = vmax.f32 %v468, 0.0
  %v563 = vmax.f32 %v481, 0.0
  %v564 = vmax.f32 %v494, 0.0
  %v565 = vmax.f32 %v507, 0.0
  %v566 = vmax.f32 %v520, 0.0
  %v567 = vmax.f32 %v533, 0.0
  %v568 = vmax.f32 %v546, 0.0
  %v569 = vmax.f32 %v559, 0.0
  %v570 = vpack.c.bf16 %v562, %v562
  %v571 = vpack.c.bf16 %v563, %v563
  %v572 = vpack.c.bf16 %v564, %v564
  %v573 = vpack.c.bf16 %v565, %v565
  %v574 = vpack.c.bf16 %v566, %v566
  %v575 = vpack.c.bf16 %v567, %v567
  %v576 = vpack.c.bf16 %v568, %v568
  %v577 = vpack.c.bf16 %v569, %v569
  %v578 = vld [vmem:[%s5] sm:$0xf]
  %v579 = vld [vmem:[%s5 + $0x4] sm:$0xf]
  %v580 = vld [vmem:[%s5 + $0x8] sm:$0xf]
  %v581 = vld [vmem:[%s5 + $0xc] sm:$0xf]
  %v582 = vld [vmem:[%s5 + $0x10] sm:$0xf]
  %v583 = vld [vmem:[%s5 + $0x14] sm:$0xf]
  %v584 = vld [vmem:[%s5 + $0x18] sm:$0xf]
  %v585 = vld [vmem:[%s5 + $0x1c] sm:$0xf]
  %v586 = vld [vmem:[%s5 + $0x20] sm:$0xf]
  %v587 = vld [vmem:[%s5 + $0x24] sm:$0xf]
  %v588 = vld [vmem:[%s5 + $0x28] sm:$0xf]
  %v589 = vld [vmem:[%s5 + $0x2c] sm:$0xf]
  %v590 = vld [vmem:[%s5 + $0x30] sm:$0xf]
  %v591 = vld [vmem:[%s5 + $0x34] sm:$0xf]
  %v592 = vld [vmem:[%s5 + $0x38] sm:$0xf]
  %v593 = vld [vmem:[%s5 + $0x3c] sm:$0xf]
  %v594 = vld [vmem:[%s5 + $0x40] sm:$0xf]
  %v595 = vld [vmem:[%s5 + $0x44] sm:$0xf]
  %v596 = vld [vmem:[%s5 + $0x48] sm:$0xf]
  %v597 = vld [vmem:[%s5 + $0x4c] sm:$0xf]
  %v598 = vld [vmem:[%s5 + $0x50] sm:$0xf]
  %v599 = vld [vmem:[%s5 + $0x54] sm:$0xf]
  %v600 = vld [vmem:[%s5 + $0x58] sm:$0xf]
  %v601 = vld [vmem:[%s5 + $0x5c] sm:$0xf]
  %v602 = vld [vmem:[%s5 + $0x60] sm:$0xf]
  %v603 = vld [vmem:[%s5 + $0x64] sm:$0xf]
  %v604 = vld [vmem:[%s5 + $0x68] sm:$0xf]
  %v605 = vld [vmem:[%s5 + $0x6c] sm:$0xf]
  %v606 = vld [vmem:[%s5 + $0x70] sm:$0xf]
  %v607 = vld [vmem:[%s5 + $0x74] sm:$0xf]
  %v608 = vld [vmem:[%s5 + $0x78] sm:$0xf]
  %v609 = vld [vmem:[%s5 + $0x7c] sm:$0xf]
  %v610 = vld [vmem:[%s5 + $0x80] sm:$0xf]
  %v611 = vld [vmem:[%s5 + $0x84] sm:$0xf]
  %v612 = vld [vmem:[%s5 + $0x88] sm:$0xf]
  %v613 = vld [vmem:[%s5 + $0x8c] sm:$0xf]
  %v614 = vld [vmem:[%s5 + $0x90] sm:$0xf]
  %v615 = vld [vmem:[%s5 + $0x94] sm:$0xf]
  %v616 = vld [vmem:[%s5 + $0x98] sm:$0xf]
  %v617 = vld [vmem:[%s5 + $0x9c] sm:$0xf]
  %v618 = vld [vmem:[%s5 + $0xa0] sm:$0xf]
  %v619 = vld [vmem:[%s5 + $0xa4] sm:$0xf]
  %v620 = vld [vmem:[%s5 + $0xa8] sm:$0xf]
  %v621 = vld [vmem:[%s5 + $0xac] sm:$0xf]
  %v622 = vld [vmem:[%s5 + $0xb0] sm:$0xf]
  %v623 = vld [vmem:[%s5 + $0xb4] sm:$0xf]
  %v624 = vld [vmem:[%s5 + $0xb8] sm:$0xf]
  %v625 = vld [vmem:[%s5 + $0xbc] sm:$0xf]
  %v626 = vld [vmem:[%s5 + $0xc0] sm:$0xf]
  %v627 = vld [vmem:[%s5 + $0xc4] sm:$0xf]
  %v628 = vld [vmem:[%s5 + $0xc8] sm:$0xf]
  %v629 = vld [vmem:[%s5 + $0xcc] sm:$0xf]
  %v630 = vld [vmem:[%s5 + $0xd0] sm:$0xf]
  %v631 = vld [vmem:[%s5 + $0xd4] sm:$0xf]
  %v632 = vld [vmem:[%s5 + $0xd8] sm:$0xf]
  %v633 = vld [vmem:[%s5 + $0xdc] sm:$0xf]
  %v634 = vld [vmem:[%s5 + $0xe0] sm:$0xf]
  %v635 = vld [vmem:[%s5 + $0xe4] sm:$0xf]
  %v636 = vld [vmem:[%s5 + $0xe8] sm:$0xf]
  %v637 = vld [vmem:[%s5 + $0xec] sm:$0xf]
  %v638 = vld [vmem:[%s5 + $0xf0] sm:$0xf]
  %v639 = vld [vmem:[%s5 + $0xf4] sm:$0xf]
  %v640 = vld [vmem:[%s5 + $0xf8] sm:$0xf]
  %v641 = vld [vmem:[%s5 + $0xfc] sm:$0xf]
  %v642 = vld [vmem:[%s5 + $0x100] sm:$0xf]
  %v643 = vld [vmem:[%s5 + $0x104] sm:$0xf]
  %v644 = vld [vmem:[%s5 + $0x108] sm:$0xf]
  %v645 = vld [vmem:[%s5 + $0x10c] sm:$0xf]
  %v646 = vld [vmem:[%s5 + $0x110] sm:$0xf]
  %v647 = vld [vmem:[%s5 + $0x114] sm:$0xf]
  %v648 = vld [vmem:[%s5 + $0x118] sm:$0xf]
  %v649 = vld [vmem:[%s5 + $0x11c] sm:$0xf]
  %v650 = vld [vmem:[%s5 + $0x120] sm:$0xf]
  %v651 = vld [vmem:[%s5 + $0x124] sm:$0xf]
  %v652 = vld [vmem:[%s5 + $0x128] sm:$0xf]
  %v653 = vld [vmem:[%s5 + $0x12c] sm:$0xf]
  %v654 = vld [vmem:[%s5 + $0x130] sm:$0xf]
  %v655 = vld [vmem:[%s5 + $0x134] sm:$0xf]
  %v656 = vld [vmem:[%s5 + $0x138] sm:$0xf]
  %v657 = vld [vmem:[%s5 + $0x13c] sm:$0xf]
  %v658 = vld [vmem:[%s5 + $0x140] sm:$0xf]
  %v659 = vld [vmem:[%s5 + $0x144] sm:$0xf]
  %v660 = vld [vmem:[%s5 + $0x148] sm:$0xf]
  %v661 = vld [vmem:[%s5 + $0x14c] sm:$0xf]
  %v662 = vld [vmem:[%s5 + $0x150] sm:$0xf]
  %v663 = vld [vmem:[%s5 + $0x154] sm:$0xf]
  %v664 = vld [vmem:[%s5 + $0x158] sm:$0xf]
  %v665 = vld [vmem:[%s5 + $0x15c] sm:$0xf]
  %v666 = vld [vmem:[%s5 + $0x160] sm:$0xf]
  %v667 = vld [vmem:[%s5 + $0x164] sm:$0xf]
  %v668 = vld [vmem:[%s5 + $0x168] sm:$0xf]
  %v669 = vld [vmem:[%s5 + $0x16c] sm:$0xf]
  %v670 = vld [vmem:[%s5 + $0x170] sm:$0xf]
  %v671 = vld [vmem:[%s5 + $0x174] sm:$0xf]
  %v672 = vld [vmem:[%s5 + $0x178] sm:$0xf]
  %v673 = vld [vmem:[%s5 + $0x17c] sm:$0xf]
  %v674 = vld [vmem:[%s5 + $0x180] sm:$0xf]
  %v675 = vld [vmem:[%s5 + $0x184] sm:$0xf]
  %v676 = vld [vmem:[%s5 + $0x188] sm:$0xf]
  %v677 = vld [vmem:[%s5 + $0x18c] sm:$0xf]
  %v678 = vld [vmem:[%s5 + $0x190] sm:$0xf]
  %v679 = vld [vmem:[%s5 + $0x194] sm:$0xf]
  %v680 = vld [vmem:[%s5 + $0x198] sm:$0xf]
  %v681 = vld [vmem:[%s5 + $0x19c] sm:$0xf]
  %v682 = vld [vmem:[%s5 + $0x1a0] sm:$0xf]
  %v683 = vld [vmem:[%s5 + $0x1a4] sm:$0xf]
  %v684 = vld [vmem:[%s5 + $0x1a8] sm:$0xf]
  %v685 = vld [vmem:[%s5 + $0x1ac] sm:$0xf]
  %v686 = vld [vmem:[%s5 + $0x1b0] sm:$0xf]
  %v687 = vld [vmem:[%s5 + $0x1b4] sm:$0xf]
  %v688 = vld [vmem:[%s5 + $0x1b8] sm:$0xf]
  %v689 = vld [vmem:[%s5 + $0x1bc] sm:$0xf]
  %v690 = vld [vmem:[%s5 + $0x1c0] sm:$0xf]
  %v691 = vld [vmem:[%s5 + $0x1c4] sm:$0xf]
  %v692 = vld [vmem:[%s5 + $0x1c8] sm:$0xf]
  %v693 = vld [vmem:[%s5 + $0x1cc] sm:$0xf]
  %v694 = vld [vmem:[%s5 + $0x1d0] sm:$0xf]
  %v695 = vld [vmem:[%s5 + $0x1d4] sm:$0xf]
  %v696 = vld [vmem:[%s5 + $0x1d8] sm:$0xf]
  %v697 = vld [vmem:[%s5 + $0x1dc] sm:$0xf]
  %v698 = vld [vmem:[%s5 + $0x1e0] sm:$0xf]
  %v699 = vld [vmem:[%s5 + $0x1e4] sm:$0xf]
  %v700 = vld [vmem:[%s5 + $0x1e8] sm:$0xf]
  %v701 = vld [vmem:[%s5 + $0x1ec] sm:$0xf]
  %v702 = vld [vmem:[%s5 + $0x1f0] sm:$0xf]
  %v703 = vld [vmem:[%s5 + $0x1f4] sm:$0xf]
  %v704 = vld [vmem:[%s5 + $0x1f8] sm:$0xf]
  %v705 = vld [vmem:[%s5 + $0x1fc] sm:$0xf]
  %v706 = vld [vmem:[%s6] sm:$0x1]
  %v708 = vperm.slane %v706, 0
  %v838 = vunpack.c.l.b16 %v578
  %v839 = vunpack.c.l.b16 %v579
  %v840 = vunpack.c.l.b16 %v580
  %v841 = vunpack.c.l.b16 %v581
  %v842 = vunpack.c.l.b16 %v582
  %v843 = vunpack.c.l.b16 %v583
  %v844 = vunpack.c.l.b16 %v584
  %v845 = vunpack.c.l.b16 %v585
  %v846 = vunpack.c.l.b16 %v586
  %v847 = vunpack.c.l.b16 %v587
  %v848 = vunpack.c.l.b16 %v588
  %v849 = vunpack.c.l.b16 %v589
  %v850 = vunpack.c.l.b16 %v590
  %v851 = vunpack.c.l.b16 %v591
  %v852 = vunpack.c.l.b16 %v592
  %v853 = vunpack.c.l.b16 %v593
  %v854 = vunpack.c.l.b16 %v594
  %v855 = vunpack.c.l.b16 %v595
  %v856 = vunpack.c.l.b16 %v596
  %v857 = vunpack.c.l.b16 %v597
  %v858 = vunpack.c.l.b16 %v598
  %v859 = vunpack.c.l.b16 %v599
  %v860 = vunpack.c.l.b16 %v600
  %v861 = vunpack.c.l.b16 %v601
  %v862 = vunpack.c.l.b16 %v602
  %v863 = vunpack.c.l.b16 %v603
  %v864 = vunpack.c.l.b16 %v604
  %v865 = vunpack.c.l.b16 %v605
  %v866 = vunpack.c.l.b16 %v606
  %v867 = vunpack.c.l.b16 %v607
  %v868 = vunpack.c.l.b16 %v608
  %v869 = vunpack.c.l.b16 %v609
  %v870 = vunpack.c.l.b16 %v610
  %v871 = vunpack.c.l.b16 %v611
  %v872 = vunpack.c.l.b16 %v612
  %v873 = vunpack.c.l.b16 %v613
  %v874 = vunpack.c.l.b16 %v614
  %v875 = vunpack.c.l.b16 %v615
  %v876 = vunpack.c.l.b16 %v616
  %v877 = vunpack.c.l.b16 %v617
  %v878 = vunpack.c.l.b16 %v618
  %v879 = vunpack.c.l.b16 %v619
  %v880 = vunpack.c.l.b16 %v620
  %v881 = vunpack.c.l.b16 %v621
  %v882 = vunpack.c.l.b16 %v622
  %v883 = vunpack.c.l.b16 %v623
  %v884 = vunpack.c.l.b16 %v624
  %v885 = vunpack.c.l.b16 %v625
  %v886 = vunpack.c.l.b16 %v626
  %v887 = vunpack.c.l.b16 %v627
  %v888 = vunpack.c.l.b16 %v628
  %v889 = vunpack.c.l.b16 %v629
  %v890 = vunpack.c.l.b16 %v630
  %v891 = vunpack.c.l.b16 %v631
  %v892 = vunpack.c.l.b16 %v632
  %v893 = vunpack.c.l.b16 %v633
  %v894 = vunpack.c.l.b16 %v634
  %v895 = vunpack.c.l.b16 %v635
  %v896 = vunpack.c.l.b16 %v636
  %v897 = vunpack.c.l.b16 %v637
  %v898 = vunpack.c.l.b16 %v638
  %v899 = vunpack.c.l.b16 %v639
  %v900 = vunpack.c.l.b16 %v640
  %v901 = vunpack.c.l.b16 %v641
  %v902 = vunpack.c.l.b16 %v642
  %v903 = vunpack.c.l.b16 %v643
  %v904 = vunpack.c.l.b16 %v644
  %v905 = vunpack.c.l.b16 %v645
  %v906 = vunpack.c.l.b16 %v646
  %v907 = vunpack.c.l.b16 %v647
  %v908 = vunpack.c.l.b16 %v648
  %v909 = vunpack.c.l.b16 %v649
  %v910 = vunpack.c.l.b16 %v650
  %v911 = vunpack.c.l.b16 %v651
  %v912 = vunpack.c.l.b16 %v652
  %v913 = vunpack.c.l.b16 %v653
  %v914 = vunpack.c.l.b16 %v654
  %v915 = vunpack.c.l.b16 %v655
  %v916 = vunpack.c.l.b16 %v656
  %v917 = vunpack.c.l.b16 %v657
  %v918 = vunpack.c.l.b16 %v658
  %v919 = vunpack.c.l.b16 %v659
  %v920 = vunpack.c.l.b16 %v660
  %v921 = vunpack.c.l.b16 %v661
  %v922 = vunpack.c.l.b16 %v662
  %v923 = vunpack.c.l.b16 %v663
  %v924 = vunpack.c.l.b16 %v664
  %v925 = vunpack.c.l.b16 %v665
  %v926 = vunpack.c.l.b16 %v666
  %v927 = vunpack.c.l.b16 %v667
  %v928 = vunpack.c.l.b16 %v668
  %v929 = vunpack.c.l.b16 %v669
  %v930 = vunpack.c.l.b16 %v670
  %v931 = vunpack.c.l.b16 %v671
  %v932 = vunpack.c.l.b16 %v672
  %v933 = vunpack.c.l.b16 %v673
  %v934 = vunpack.c.l.b16 %v674
  %v935 = vunpack.c.l.b16 %v675
  %v936 = vunpack.c.l.b16 %v676
  %v937 = vunpack.c.l.b16 %v677
  %v938 = vunpack.c.l.b16 %v678
  %v939 = vunpack.c.l.b16 %v679
  %v940 = vunpack.c.l.b16 %v680
  %v941 = vunpack.c.l.b16 %v681
  %v942 = vunpack.c.l.b16 %v682
  %v943 = vunpack.c.l.b16 %v683
  %v944 = vunpack.c.l.b16 %v684
  %v945 = vunpack.c.l.b16 %v685
  %v946 = vunpack.c.l.b16 %v686
  %v947 = vunpack.c.l.b16 %v687
  %v948 = vunpack.c.l.b16 %v688
  %v949 = vunpack.c.l.b16 %v689
  %v950 = vunpack.c.l.b16 %v690
  %v951 = vunpack.c.l.b16 %v691
  %v952 = vunpack.c.l.b16 %v692
  %v953 = vunpack.c.l.b16 %v693
  %v954 = vunpack.c.l.b16 %v694
  %v955 = vunpack.c.l.b16 %v695
  %v956 = vunpack.c.l.b16 %v696
  %v957 = vunpack.c.l.b16 %v697
  %v958 = vunpack.c.l.b16 %v698
  %v959 = vunpack.c.l.b16 %v699
  %v960 = vunpack.c.l.b16 %v700
  %v961 = vunpack.c.l.b16 %v701
  %v962 = vunpack.c.l.b16 %v702
  %v963 = vunpack.c.l.b16 %v703
  %v964 = vunpack.c.l.b16 %v704
  %v965 = vunpack.c.l.b16 %v705
  %v966 = vpack.c.b16 %v839, %v838
  %v967 = vpack.c.b16 %v841, %v840
  %v968 = vpack.c.b16 %v843, %v842
  %v969 = vpack.c.b16 %v845, %v844
  %v970 = vpack.c.b16 %v847, %v846
  %v971 = vpack.c.b16 %v849, %v848
  %v972 = vpack.c.b16 %v851, %v850
  %v973 = vpack.c.b16 %v853, %v852
  %v974 = vpack.c.b16 %v855, %v854
  %v975 = vpack.c.b16 %v857, %v856
  %v976 = vpack.c.b16 %v859, %v858
  %v977 = vpack.c.b16 %v861, %v860
  %v978 = vpack.c.b16 %v863, %v862
  %v979 = vpack.c.b16 %v865, %v864
  %v980 = vpack.c.b16 %v867, %v866
  %v981 = vpack.c.b16 %v869, %v868
  %v982 = vpack.c.b16 %v871, %v870
  %v983 = vpack.c.b16 %v873, %v872
  %v984 = vpack.c.b16 %v875, %v874
  %v985 = vpack.c.b16 %v877, %v876
  %v986 = vpack.c.b16 %v879, %v878
  %v987 = vpack.c.b16 %v881, %v880
  %v988 = vpack.c.b16 %v883, %v882
  %v989 = vpack.c.b16 %v885, %v884
  %v990 = vpack.c.b16 %v887, %v886
  %v991 = vpack.c.b16 %v889, %v888
  %v992 = vpack.c.b16 %v891, %v890
  %v993 = vpack.c.b16 %v893, %v892
  %v994 = vpack.c.b16 %v895, %v894
  %v995 = vpack.c.b16 %v897, %v896
  %v996 = vpack.c.b16 %v899, %v898
  %v997 = vpack.c.b16 %v901, %v900
  %v998 = vpack.c.b16 %v903, %v902
  %v999 = vpack.c.b16 %v905, %v904
  %v1000 = vpack.c.b16 %v907, %v906
  %v1001 = vpack.c.b16 %v909, %v908
  %v1002 = vpack.c.b16 %v911, %v910
  %v1003 = vpack.c.b16 %v913, %v912
  %v1004 = vpack.c.b16 %v915, %v914
  %v1005 = vpack.c.b16 %v917, %v916
  %v1006 = vpack.c.b16 %v919, %v918
  %v1007 = vpack.c.b16 %v921, %v920
  %v1008 = vpack.c.b16 %v923, %v922
  %v1009 = vpack.c.b16 %v925, %v924
  %v1010 = vpack.c.b16 %v927, %v926
  %v1011 = vpack.c.b16 %v929, %v928
  %v1012 = vpack.c.b16 %v931, %v930
  %v1013 = vpack.c.b16 %v933, %v932
  %v1014 = vpack.c.b16 %v935, %v934
  %v1015 = vpack.c.b16 %v937, %v936
  %v1016 = vpack.c.b16 %v939, %v938
  %v1017 = vpack.c.b16 %v941, %v940
  %v1018 = vpack.c.b16 %v943, %v942
  %v1019 = vpack.c.b16 %v945, %v944
  %v1020 = vpack.c.b16 %v947, %v946
  %v1021 = vpack.c.b16 %v949, %v948
  %v1022 = vpack.c.b16 %v951, %v950
  %v1023 = vpack.c.b16 %v953, %v952
  %v1024 = vpack.c.b16 %v955, %v954
  %v1025 = vpack.c.b16 %v957, %v956
  %v1026 = vpack.c.b16 %v959, %v958
  %v1027 = vpack.c.b16 %v961, %v960
  %v1028 = vpack.c.b16 %v963, %v962
  %v1029 = vpack.c.b16 %v965, %v964
  %1094 = vmatpush.bf16.msra.mxu0 %v973
  %1095 = vmatpush.bf16.msra.mxu0 %v972
  %1096 = vmatpush.bf16.msra.mxu0 %v971
  %1097 = vmatpush.bf16.msra.mxu0 %v970
  %1098 = vmatpush.bf16.msra.mxu0 %v969
  %1099 = vmatpush.bf16.msra.mxu0 %v968
  %1100 = vmatpush.bf16.msra.mxu0 %v967
  %1101 = vmatpush.bf16.msra.mxu0 %v966
  %1102 = vmatmul.bf16.gmra.mxu0 %v570
  %v1103 = vpop.f32.mrf.mxu0
  %v1104 = vadd.f32 %v708, %v1103
  %v1105 = vpop.f32.mrf.mxu0
  %1106 = vdwg.mxu0
  %1107 = vmatpush.bf16.msra.mxu0 %v981
  %1108 = vmatpush.bf16.msra.mxu0 %v980
  %1109 = vmatpush.bf16.msra.mxu0 %v979
  %1110 = vmatpush.bf16.msra.mxu0 %v978
  %1111 = vmatpush.bf16.msra.mxu0 %v977
  %1112 = vmatpush.bf16.msra.mxu0 %v976
  %1113 = vmatpush.bf16.msra.mxu0 %v975
  %1114 = vmatpush.bf16.msra.mxu0 %v974
  %1115 = vmatmul.bf16.gmra.mxu0 %v571
  %v1116 = vpop.f32.mrf.mxu0
  %v1117 = vadd.f32 %v1104, %v1116
  %v1118 = vpop.f32.mrf.mxu0
  %1119 = vdwg.mxu0
  %1120 = vmatpush.bf16.msra.mxu0 %v989
  %1121 = vmatpush.bf16.msra.mxu0 %v988
  %1122 = vmatpush.bf16.msra.mxu0 %v987
  %1123 = vmatpush.bf16.msra.mxu0 %v986
  %1124 = vmatpush.bf16.msra.mxu0 %v985
  %1125 = vmatpush.bf16.msra.mxu0 %v984
  %1126 = vmatpush.bf16.msra.mxu0 %v983
  %1127 = vmatpush.bf16.msra.mxu0 %v982
  %1128 = vmatmul.bf16.gmra.mxu0 %v572
  %v1129 = vpop.f32.mrf.mxu0
  %v1130 = vadd.f32 %v1117, %v1129
  %v1131 = vpop.f32.mrf.mxu0
  %1132 = vdwg.mxu0
  %1133 = vmatpush.bf16.msra.mxu0 %v997
  %1134 = vmatpush.bf16.msra.mxu0 %v996
  %1135 = vmatpush.bf16.msra.mxu0 %v995
  %1136 = vmatpush.bf16.msra.mxu0 %v994
  %1137 = vmatpush.bf16.msra.mxu0 %v993
  %1138 = vmatpush.bf16.msra.mxu0 %v992
  %1139 = vmatpush.bf16.msra.mxu0 %v991
  %1140 = vmatpush.bf16.msra.mxu0 %v990
  %1141 = vmatmul.bf16.gmra.mxu0 %v573
  %v1142 = vpop.f32.mrf.mxu0
  %v1143 = vadd.f32 %v1130, %v1142
  %v1144 = vpop.f32.mrf.mxu0
  %1145 = vdwg.mxu0
  %1146 = vmatpush.bf16.msra.mxu0 %v1005
  %1147 = vmatpush.bf16.msra.mxu0 %v1004
  %1148 = vmatpush.bf16.msra.mxu0 %v1003
  %1149 = vmatpush.bf16.msra.mxu0 %v1002
  %1150 = vmatpush.bf16.msra.mxu0 %v1001
  %1151 = vmatpush.bf16.msra.mxu0 %v1000
  %1152 = vmatpush.bf16.msra.mxu0 %v999
  %1153 = vmatpush.bf16.msra.mxu0 %v998
  %1154 = vmatmul.bf16.gmra.mxu0 %v574
  %v1155 = vpop.f32.mrf.mxu0
  %v1156 = vadd.f32 %v1143, %v1155
  %v1157 = vpop.f32.mrf.mxu0
  %1158 = vdwg.mxu0
  %1159 = vmatpush.bf16.msra.mxu0 %v1013
  %1160 = vmatpush.bf16.msra.mxu0 %v1012
  %1161 = vmatpush.bf16.msra.mxu0 %v1011
  %1162 = vmatpush.bf16.msra.mxu0 %v1010
  %1163 = vmatpush.bf16.msra.mxu0 %v1009
  %1164 = vmatpush.bf16.msra.mxu0 %v1008
  %1165 = vmatpush.bf16.msra.mxu0 %v1007
  %1166 = vmatpush.bf16.msra.mxu0 %v1006
  %1167 = vmatmul.bf16.gmra.mxu0 %v575
  %v1168 = vpop.f32.mrf.mxu0
  %v1169 = vadd.f32 %v1156, %v1168
  %v1170 = vpop.f32.mrf.mxu0
  %1171 = vdwg.mxu0
  %1172 = vmatpush.bf16.msra.mxu0 %v1021
  %1173 = vmatpush.bf16.msra.mxu0 %v1020
  %1174 = vmatpush.bf16.msra.mxu0 %v1019
  %1175 = vmatpush.bf16.msra.mxu0 %v1018
  %1176 = vmatpush.bf16.msra.mxu0 %v1017
  %1177 = vmatpush.bf16.msra.mxu0 %v1016
  %1178 = vmatpush.bf16.msra.mxu0 %v1015
  %1179 = vmatpush.bf16.msra.mxu0 %v1014
  %1180 = vmatmul.bf16.gmra.mxu0 %v576
  %v1181 = vpop.f32.mrf.mxu0
  %v1182 = vadd.f32 %v1169, %v1181
  %v1183 = vpop.f32.mrf.mxu0
  %1184 = vdwg.mxu0
  %1185 = vmatpush.bf16.msra.mxu0 %v1029
  %1186 = vmatpush.bf16.msra.mxu0 %v1028
  %1187 = vmatpush.bf16.msra.mxu0 %v1027
  %1188 = vmatpush.bf16.msra.mxu0 %v1026
  %1189 = vmatpush.bf16.msra.mxu0 %v1025
  %1190 = vmatpush.bf16.msra.mxu0 %v1024
  %1191 = vmatpush.bf16.msra.mxu0 %v1023
  %1192 = vmatpush.bf16.msra.mxu0 %v1022
  %1193 = vmatmul.bf16.gmra.mxu0 %v577
  %v1194 = vpop.f32.mrf.mxu0
  %v1195 = vadd.f32 %v1182, %v1194
  %v1196 = vpop.f32.mrf.mxu0
  %1197 = vdwg.mxu0
  %v1198 = vmax.f32 %v1195, 0.0
  %v1199 = vpack.c.bf16 %v1198, %v1198
  %v1200 = vld [vmem:[%s7] sm:$0xf]
  %v1201 = vld [vmem:[%s7 + $0x4] sm:$0xf]
  %v1202 = vld [vmem:[%s7 + $0x8] sm:$0xf]
  %v1203 = vld [vmem:[%s7 + $0xc] sm:$0xf]
  %v1204 = vld [vmem:[%s7 + $0x10] sm:$0xf]
  %v1205 = vld [vmem:[%s7 + $0x14] sm:$0xf]
  %v1206 = vld [vmem:[%s7 + $0x18] sm:$0xf]
  %v1207 = vld [vmem:[%s7 + $0x1c] sm:$0xf]
  %v1208 = vld [vmem:[%s7 + $0x20] sm:$0xf]
  %v1209 = vld [vmem:[%s7 + $0x24] sm:$0xf]
  %v1210 = vld [vmem:[%s7 + $0x28] sm:$0xf]
  %v1211 = vld [vmem:[%s7 + $0x2c] sm:$0xf]
  %v1212 = vld [vmem:[%s7 + $0x30] sm:$0xf]
  %v1213 = vld [vmem:[%s7 + $0x34] sm:$0xf]
  %v1214 = vld [vmem:[%s7 + $0x38] sm:$0xf]
  %v1215 = vld [vmem:[%s7 + $0x3c] sm:$0xf]
  %v1216 = vld [vmem:[%s8] sm:$0x1]
  %v1218 = vperm.slane %v1216, 0
  %v1236 = vunpack.c.l.b16 %v1200
  %v1237 = vunpack.c.l.b16 %v1201
  %v1238 = vunpack.c.l.b16 %v1202
  %v1239 = vunpack.c.l.b16 %v1203
  %v1240 = vunpack.c.l.b16 %v1204
  %v1241 = vunpack.c.l.b16 %v1205
  %v1242 = vunpack.c.l.b16 %v1206
  %v1243 = vunpack.c.l.b16 %v1207
  %v1244 = vunpack.c.l.b16 %v1208
  %v1245 = vunpack.c.l.b16 %v1209
  %v1246 = vunpack.c.l.b16 %v1210
  %v1247 = vunpack.c.l.b16 %v1211
  %v1248 = vunpack.c.l.b16 %v1212
  %v1249 = vunpack.c.l.b16 %v1213
  %v1250 = vunpack.c.l.b16 %v1214
  %v1251 = vunpack.c.l.b16 %v1215
  %v1252 = vpack.c.b16 %v1237, %v1236
  %v1253 = vpack.c.b16 %v1239, %v1238
  %v1254 = vpack.c.b16 %v1241, %v1240
  %v1255 = vpack.c.b16 %v1243, %v1242
  %v1256 = vpack.c.b16 %v1245, %v1244
  %v1257 = vpack.c.b16 %v1247, %v1246
  %v1258 = vpack.c.b16 %v1249, %v1248
  %v1259 = vpack.c.b16 %v1251, %v1250
  %1268 = vmatpush.bf16.msra.mxu0 %v1259
  %1269 = vmatpush.bf16.msra.mxu0 %v1258
  %1270 = vmatpush.bf16.msra.mxu0 %v1257
  %1271 = vmatpush.bf16.msra.mxu0 %v1256
  %1272 = vmatpush.bf16.msra.mxu0 %v1255
  %1273 = vmatpush.bf16.msra.mxu0 %v1254
  %1274 = vmatpush.bf16.msra.mxu0 %v1253
  %1275 = vmatpush.bf16.msra.mxu0 %v1252
  %1276 = vmatmul.bf16.gmra.mxu0 %v1199
  %v1277 = vpop.f32.mrf.mxu0
  %v1278 = vadd.f32 %v1218, %v1277
  %v1279 = vpop.f32.mrf.mxu0
  %1280 = vdwg.mxu0
  %1281 = vst [vmem:[%s9] sm:$0xff] %v1278
  // Predicated region
  $region38: #{earthquake_classifier_forward.1} parent=0 // pred_check
    _
  $region39: #{earthquake_classifier_forward.1} parent=0 // pred_check_branch
    %1283 = sbr.rel (0) target = $region41
  $region40: #{earthquake_classifier_forward.1} parent=0 // pred_region
    _
  $region41: #{earthquake_classifier_forward.1} parent=0 // pred_fallthru
    _
  // Predicated region
  $region42: #{earthquake_classifier_forward.1} parent=0 // pred_check
    _
  $region43: #{earthquake_classifier_forward.1} parent=0 // pred_check_branch
    %1285 = sbr.rel (0) target = $region45
  $region44: #{earthquake_classifier_forward.1} parent=0 // pred_region
    _
  $region45: #{earthquake_classifier_forward.1} parent=0 // pred_fallthru
    _

</llo_original>
